<compile_context>
chip_gen: v7x
topology: tpu7x:2x2x1
jax: 0.10.0
libtpu: 0.0.40
codegen_flags: <defaults>
</compile_context>

<pallas_src>
import jax
import jax.numpy as jnp
from jax.experimental import pallas as pl
from jax.experimental.pallas import tpu as pltpu


H_CONST = 0.5          # self.h in the PyTorch module
EPS = 1e-8             # self.eps
INPUT_FLOOR = 1e-12    # guard against cancellation in the MXU rewrite


def _ante_logtsk_kernel(x_ref, w_ref, m2cw_ref, const_ref, o_ref):
    """One batch tile.

    x_ref:     [TN, D]  pipelined batch tile
    w_ref:     [D, R]   resident  h / sigma^2 + eps
    m2cw_ref:  [D, R]   resident  -2 * centers * w
    const_ref: [1, R]   resident  sum_d centers^2 * w
    o_ref:     [TN, R]  normalized firing strengths
    """
    x = x_ref[...]                                                   # [TN, D]

    # sum_d (x - c)^2 * w  ==  (x*x) @ w  +  x @ (-2*c*w)  +  sum_d c^2*w
    quad = jnp.dot(x * x, w_ref[...], preferred_element_type=jnp.float32)
    cross = jnp.dot(x, m2cw_ref[...], preferred_element_type=jnp.float32)
    inputs = quad + cross + const_ref[...]                           # [TN, R]

    # The rewrite can dip slightly non-positive when x ~ a center; the
    # reference expression is >= 0, so clamp.  (Exact coincidence is inf/NaN
    # in the PyTorch reference; here it becomes a ~one-hot row.)
    inputs = jnp.maximum(inputs, INPUT_FLOOR)

    # frs = 1 / inputs on the EUP + one Newton refinement (~f32 accuracy).
    frs = pl.reciprocal(inputs, approx=True)
    frs = frs * (2.0 - inputs * frs)

    denom = jnp.sum(frs, axis=1, keepdims=True)                      # [TN, 1]
    inv = pl.reciprocal(denom, approx=True)
    inv = inv * (2.0 - denom * inv)

    o_ref[...] = (frs * inv).astype(o_ref.dtype)


def _cdiv(a, b):
    return -(-a // b)


def _round_up(a, m):
    return _cdiv(a, m) * m


def _pick_tile_n(n, d, r, requested, budget_bytes=24 * 1024 * 1024,
                 min_steps=4):
    """Batch tile: multiple of 8, <= requested, double-buffered x/out tiles
    within a VMEM budget, and (for large N) at least `min_steps` grid steps so
    both v7x TensorCores get work and the pipeline stays double-buffered."""
    n8 = _round_up(max(n, 1), 8)
    t = min(_round_up(max(requested, 8), 8), n8)
    per_row = 2 * 4 * (d + r)                 # 2 buffers, f32, x row + out row
    while t > 8 and t * per_row > budget_bytes:
        t = max(8, _round_up(t // 2, 8))
    if n > min_steps * 256:
        t = min(t, max(256, _round_up(_cdiv(n, min_steps), 8)))
    return max(8, t)


def _vmem_limit_bytes(footprint_bytes):
    """Only ever *raise* the scoped-VMEM limit (never below the 16/32 MiB
    defaults), capped at ~60% of physical VMEM (v7x has only 64 MiB/TC)."""
    want = max(32 * 1024 * 1024, 2 * footprint_bytes)
    try:
        cap = int(pltpu.get_tpu_info().vmem_capacity_bytes * 0.6)
    except Exception:
        cap = 38 * 1024 * 1024            # conservative: safe on v7x 64 MiB/TC
    return int(min(want, max(cap, 32 * 1024 * 1024)))


def ante_gaussian_logtsk(x, centers, sigmas, *, tile_n=4096):
    """x: [N, D]; centers/sigmas: [D, R]  ->  [N, R] (each row sums to 1)."""
    N, D = x.shape
    Dc, R = centers.shape
    assert D == Dc and sigmas.shape == (D, R)

    x = x.astype(jnp.float32)
    centers = centers.astype(jnp.float32)
    sigmas = sigmas.astype(jnp.float32)

    # Per-rule weights hoisted out of the grid loop (computed once; the
    # constant-index blocks below are DMA'd into VMEM only once).
    w = H_CONST / (sigmas * sigmas) + EPS                            # [D, R]
    m2cw = -2.0 * centers * w                                        # [D, R]
    const = jnp.sum(centers * centers * w, axis=0, keepdims=True)    # [1, R]

    # No rule-axis padding and no batch padding:
    #   * full-R blocks keep the output HBM stream at its logical size,
    #   * grid = cdiv(N, tile) lets Pallas mask the partial last block.
    tile = _pick_tile_n(N, D, R, tile_n)
    grid = (_cdiv(N, tile),)

    f32 = 4
    footprint = (2 * tile * (D + R)              # double-buffered x/out tiles
                 + 2 * (2 * D * R + R)) * f32    # resident parameter blocks
    # TODO(synk): for very large in_dim * n_rules, add a parallel rule-axis
    # grid dim (tiled w / m2cw) and an arbitrary K-axis with a scratch
    # accumulator; at this module's scale the parameter blocks are a few KB
    # and stay resident, so extra grid dims would only add step overhead.

    return pl.pallas_call(
        _ante_logtsk_kernel,
        out_shape=jax.ShapeDtypeStruct((N, R), jnp.float32),
        grid=grid,
        in_specs=[
            pl.BlockSpec((tile, D), lambda i: (i, 0)),    # x tile (pipelined)
            pl.BlockSpec((D, R), lambda i: (0, 0)),       # w          (resident)
            pl.BlockSpec((D, R), lambda i: (0, 0)),       # -2*c*w     (resident)
            pl.BlockSpec((1, R), lambda i: (0, 0)),       # sum c^2*w  (resident)
        ],
        out_specs=pl.BlockSpec((tile, R), lambda i: (i, 0)),
        compiler_params=pltpu.CompilerParams(
            dimension_semantics=("parallel",),
            vmem_limit_bytes=_vmem_limit_bytes(footprint),
        ),
    )(x, w, m2cw, const)


def _reference(x, centers, sigmas):
    # Direct transcription of the PyTorch forward.
    w = H_CONST / (sigmas ** 2) + EPS                                # [D, R]
    diff = x[:, :, None] - centers[None, :, :]                       # [N, D, R]
    inputs = jnp.sum(diff ** 2 * w[None, :, :], axis=1)              # [N, R]
    frs = 1.0 / inputs
    return frs / jnp.sum(frs, axis=1, keepdims=True)


if __name__ == "__main__":
    key = jax.random.PRNGKey(0)
    kx, kc, ks, k2 = jax.random.split(key, 4)

    # Case 1: module-scale shapes (batch=8, in_dim=16, n_rules=8).
    N, D, R = 8, 16, 8
    x = jax.random.normal(kx, (N, D), dtype=jnp.float32)
    centers = jax.random.normal(kc, (D, R), dtype=jnp.float32)
    sigmas = 1.0 + 0.2 * jax.random.normal(ks, (D, R), dtype=jnp.float32)

    out = jax.block_until_ready(ante_gaussian_logtsk(x, centers, sigmas))
    ref = _reference(x, centers, sigmas)
    assert out.shape == (N, R)
    assert jnp.allclose(out, ref, rtol=1e-5, atol=1e-6), (
        f"max abs err = {jnp.max(jnp.abs(out - ref))}")

    # Case 2: batch not a multiple of the tile -> exercises the Pallas-masked
    # partial last block (no wrapper pad / post-slice) and a 4-step pipelined
    # parallel grid.
    N2 = 100
    x2 = jax.random.normal(k2, (N2, D), dtype=jnp.float32)
    out2 = jax.block_until_ready(
        ante_gaussian_logtsk(x2, centers, sigmas, tile_n=32))
    ref2 = _reference(x2, centers, sigmas)
    assert out2.shape == (N2, R)
    assert jnp.allclose(out2, ref2, rtol=1e-5, atol=1e-6), (
        f"max abs err = {jnp.max(jnp.abs(out2 - ref2))}")

    # Case 3: sample near a center.  The MXU quad-cross rewrite loses relative
    # precision here (cancellation), but both kernel and reference saturate
    # the row towards a one-hot on that rule; check structure + relaxed tol.
    x3 = x.at[0, :].set(centers[:, 3] + 1e-2)
    out3 = jax.block_until_ready(ante_gaussian_logtsk(x3, centers, sigmas))
    ref3 = _reference(x3, centers, sigmas)
    assert jnp.allclose(jnp.sum(out3, axis=1), 1.0, rtol=1e-5, atol=1e-5)
    assert int(jnp.argmax(out3[0])) == int(jnp.argmax(ref3[0]))
    assert jnp.allclose(out3, ref3, rtol=1e-3, atol=1e-5), (
        f"max abs err = {jnp.max(jnp.abs(out3 - ref3))}")

    print("KERNEL_OK")
</pallas_src>

<mosaic_0001>
module attributes {stable_mosaic.version = 11 : i64} {
  func.func @_ante_logtsk_kernel(%arg0: i32, %arg1: memref<8x16xf32, #tpu.memory_space<vmem>>, %arg2: memref<16x8xf32, #tpu.memory_space<vmem>>, %arg3: memref<16x8xf32, #tpu.memory_space<vmem>>, %arg4: memref<1x8xf32, #tpu.memory_space<vmem>>, %arg5: memref<8x8xf32, #tpu.memory_space<vmem>>) attributes {dimension_semantics = [#tpu.dimension_semantics<parallel>], iteration_bounds = array<i64: 1>, scalar_prefetch = 0 : i64, scratch_operands = 0 : i64, tpu.core_type = #tpu.core_type<tc>, window_params = [{transform_indices = @transform_0, window_bounds = array<i64: 8, 16>}, {pipeline_mode = #tpu.pipeline_mode<synchronous>, transform_indices = @transform_1, window_bounds = array<i64: 16, 8>}, {pipeline_mode = #tpu.pipeline_mode<synchronous>, transform_indices = @transform_2, window_bounds = array<i64: 16, 8>}, {pipeline_mode = #tpu.pipeline_mode<synchronous>, transform_indices = @transform_3, window_bounds = array<i64: 1, 8>}, {transform_indices = @transform_4, window_bounds = array<i64: 8, 8>}]} {
    %c0 = arith.constant 0 : index
    %c0_0 = arith.constant 0 : index
    %0 = vector.load %arg1[%c0, %c0_0] : memref<8x16xf32, #tpu.memory_space<vmem>>, vector<8x16xf32>
    %1 = arith.mulf %0, %0 : vector<8x16xf32>
    %c0_1 = arith.constant 0 : index
    %c0_2 = arith.constant 0 : index
    %2 = vector.load %arg2[%c0_1, %c0_2] : memref<16x8xf32, #tpu.memory_space<vmem>>, vector<16x8xf32>
    %cst = arith.constant dense<0.000000e+00> : vector<8x8xf32>
    %3 = tpu.matmul %1, %2, %cst {dimension_numbers = #tpu.dot_dimension_numbers<[1], [0], [0], [1], [0, 0, 1, 1], [], []>} : vector<8x16xf32>, vector<16x8xf32>, vector<8x8xf32> -> vector<8x8xf32>
    %c0_3 = arith.constant 0 : index
    %c0_4 = arith.constant 0 : index
    %4 = vector.load %arg3[%c0_3, %c0_4] : memref<16x8xf32, #tpu.memory_space<vmem>>, vector<16x8xf32>
    %cst_5 = arith.constant dense<0.000000e+00> : vector<8x8xf32>
    %5 = tpu.matmul %0, %4, %cst_5 {dimension_numbers = #tpu.dot_dimension_numbers<[1], [0], [0], [1], [0, 0, 1, 1], [], []>} : vector<8x16xf32>, vector<16x8xf32>, vector<8x8xf32> -> vector<8x8xf32>
    %6 = arith.addf %3, %5 : vector<8x8xf32>
    %c0_6 = arith.constant 0 : index
    %c0_7 = arith.constant 0 : index
    %7 = vector.load %arg4[%c0_6, %c0_7] : memref<1x8xf32, #tpu.memory_space<vmem>>, vector<1x8xf32>
    %8 = vector.broadcast %7 : vector<1x8xf32> to vector<8x8xf32>
    %9 = arith.addf %6, %8 : vector<8x8xf32>
    %cst_8 = arith.constant 9.99999996E-13 : f32
    %10 = vector.broadcast %cst_8 : f32 to vector<8x8xf32>
    %11 = arith.maximumf %9, %10 : vector<8x8xf32>
    %12 = tpu.reciprocal %11 {approx = true} : vector<8x8xf32> -> vector<8x8xf32>
    %13 = arith.mulf %11, %12 : vector<8x8xf32>
    %cst_9 = arith.constant 2.000000e+00 : f32
    %14 = vector.broadcast %cst_9 : f32 to vector<8x8xf32>
    %15 = arith.subf %14, %13 : vector<8x8xf32>
    %16 = arith.mulf %12, %15 : vector<8x8xf32>
    %cst_10 = arith.constant dense<0.000000e+00> : vector<8xf32>
    %17 = vector.multi_reduction <add>, %16, %cst_10 [1] : vector<8x8xf32> to vector<8xf32>
    %18 = vector.shape_cast %17 : vector<8xf32> to vector<8x1xf32>
    %19 = tpu.reciprocal %18 {approx = true} : vector<8x1xf32> -> vector<8x1xf32>
    %20 = arith.mulf %18, %19 : vector<8x1xf32>
    %cst_11 = arith.constant 2.000000e+00 : f32
    %21 = vector.broadcast %cst_11 : f32 to vector<8x1xf32>
    %22 = arith.subf %21, %20 : vector<8x1xf32>
    %23 = arith.mulf %19, %22 : vector<8x1xf32>
    %24 = vector.broadcast %23 : vector<8x1xf32> to vector<8x8xf32>
    %25 = arith.mulf %16, %24 : vector<8x8xf32>
    %c0_12 = arith.constant 0 : index
    %c0_13 = arith.constant 0 : index
    %26 = vector.load %arg5[%c0_12, %c0_13] : memref<8x8xf32, #tpu.memory_space<vmem>>, vector<8x8xf32>
    tpu.vector_store %arg5[%c0_12, %c0_13], %25 {strides = array<i32>} : memref<8x8xf32, #tpu.memory_space<vmem>>, vector<8x8xf32>,
    return
  }
  func.func @transform_0(%arg0: i32) -> (i32, i32) {
    %c0_i32 = arith.constant 0 : i32
    %c0_i32_0 = arith.constant 0 : i32
    return %arg0, %c0_i32 : i32, i32
  }
  func.func @transform_1(%arg0: i32) -> (i32, i32) {
    %c0_i32 = arith.constant 0 : i32
    %c0_i32_0 = arith.constant 0 : i32
    %c0_i32_1 = arith.constant 0 : i32
    return %c0_i32, %c0_i32_0 : i32, i32
  }
  func.func @transform_2(%arg0: i32) -> (i32, i32) {
    %c0_i32 = arith.constant 0 : i32
    %c0_i32_0 = arith.constant 0 : i32
    %c0_i32_1 = arith.constant 0 : i32
    return %c0_i32, %c0_i32_0 : i32, i32
  }
  func.func @transform_3(%arg0: i32) -> (i32, i32) {
    %c0_i32 = arith.constant 0 : i32
    %c0_i32_0 = arith.constant 0 : i32
    %c0_i32_1 = arith.constant 0 : i32
    return %c0_i32, %c0_i32_0 : i32, i32
  }
  func.func @transform_4(%arg0: i32) -> (i32, i32) {
    %c0_i32 = arith.constant 0 : i32
    %c0_i32_0 = arith.constant 0 : i32
    return %arg0, %c0_i32 : i32, i32
  }
}

</mosaic_0001>

<llo_original>
// kernel: tpu_custom_call.1
$region0: #{tpu_custom_call.1}
  #allocation0 [shape = 'u32[]', space=smem, size = 0x4, offset = 0x4, fixed_abs, tag = 'smem constant byte address 0x4 - core index']
  #allocation1 [shape = 'u32[144,128]{1,0:T(1,128)}', space=vmem, size = 0x12000, scoped, tag = 'internal scratch']
  %s0 = inlined_call_operand.vmem [shape: f32[8,16], index: 0, kind: input, shape index: {}]
  %s1 = inlined_call_operand.vmem [shape: f32[16,8], index: 1, kind: input, shape index: {}]
  %s2 = inlined_call_operand.vmem [shape: f32[16,8], index: 2, kind: input, shape index: {}]
  %s3 = inlined_call_operand.vmem [shape: f32[1,8], index: 3, kind: input, shape index: {}]
  %s4 = inlined_call_operand.hbm [shape: f32[8,8], index: 4, kind: output, shape index: {}]
  %s5 = sld [smem:[#allocation0]]
  $region26: #{tpu_custom_call.1} parent=0
    _
  %s7 = ssub.s32 1, %s5
  %s8 = scalar_select 0, %s7, %s5
  $region1: #{tpu_custom_call.1} parent=0
    #allocation2 [shape = 'u8[4096]{0}', space=vmem, size = 0x1000, scoped, tag = 'output window, operand 0, single buffered']
    #allocation3 [shape = 's32[1]{0}', space=sflag, size = 0x4, scoped, tag = 'scoped memory for tpu_custom_call.1']
    %9 = vsyncpa [#allocation3], 0
    // Predicated region
    $region2: #{tpu_custom_call.1} parent=1 // pred_check
      _
    $region3: #{tpu_custom_call.1} parent=1 // pred_check_branch
      %11 = sbr.rel (0) target = $region5
    $region4: #{tpu_custom_call.1} parent=1 // pred_region
      _
    $region5: #{tpu_custom_call.1} parent=1 // pred_fallthru
      _
    // Predicated region
    $region6: #{tpu_custom_call.1} parent=1 // pred_check
      _
    $region7: #{tpu_custom_call.1} parent=1 // pred_check_branch
      %13 = sbr.rel (0) target = $region9
    $region8: #{tpu_custom_call.1} parent=1 // pred_region
      _
    $region9: #{tpu_custom_call.1} parent=1 // pred_fallthru
      _
    // Predicated region
    $region10: #{tpu_custom_call.1} parent=1 // pred_check
      _
    $region11: #{tpu_custom_call.1} parent=1 // pred_check_branch
      %15 = sbr.rel (0) target = $region13
    $region12: #{tpu_custom_call.1} parent=1 // pred_region
      _
    $region13: #{tpu_custom_call.1} parent=1 // pred_fallthru
      _
    // Predicated region
    $region14: #{tpu_custom_call.1} parent=1 // pred_check
      _
    $region15: #{tpu_custom_call.1} parent=1 // pred_check_branch
      %17 = sbr.rel (0) target = $region17
    $region16: #{tpu_custom_call.1} parent=1 // pred_region
      _
    $region17: #{tpu_custom_call.1} parent=1 // pred_fallthru
      _
    %v18 = vld [vmem:[%s0] sm:$0xff]
    %v19 = vmul.f32 %v18, %v18
    %v20 = vld [vmem:[%s1] sm:$0xff]
    %v21 = vld [vmem:[%s1 + $0x8] sm:$0xff]
    %v22 = vld [vmem:[%s2] sm:$0xff]
    %v23 = vld [vmem:[%s2 + $0x8] sm:$0xff]
    %vm24 = vcmask 130048
    %v26 = vsel %vm24, %v18, 0
    %28 = vmatprep.subr.mxu0 0.0
    %29 = vmatpush1.msra.mxu0 %v22
    %30 = vmatprep.subr.mxu0 0.0
    %31 = vmatpush1.msra.mxu0 %v23
    %32 = vmatprep.subr.mxu0 0.0
    %33 = vmatpush1.msra.mxu0 0.0
    %34 = vmatprep.subr.mxu0 0.0
    %35 = vmatpush1.msra.mxu0 0.0
    %36 = vmatprep.subr.mxu0 0.0
    %37 = vmatpush1.msra.mxu0 0.0
    %38 = vmatprep.subr.mxu0 0.0
    %39 = vmatpush1.msra.mxu0 0.0
    %40 = vmatprep.subr.mxu0 0.0
    %41 = vmatpush1.msra.mxu0 0.0
    %42 = vmatprep.subr.mxu0 0.0
    %43 = vmatpush1.msra.mxu0 0.0
    %44 = vmatprep.subr.mxu0 0.0
    %45 = vmatpush1.msra.mxu0 0.0
    %46 = vmatprep.subr.mxu0 0.0
    %47 = vmatpush1.msra.mxu0 0.0
    %48 = vmatprep.subr.mxu0 0.0
    %49 = vmatpush1.msra.mxu0 0.0
    %50 = vmatprep.subr.mxu0 0.0
    %51 = vmatpush1.msra.mxu0 0.0
    %52 = vmatprep.subr.mxu0 0.0
    %53 = vmatpush1.msra.mxu0 0.0
    %54 = vmatprep.subr.mxu0 0.0
    %55 = vmatpush1.msra.mxu0 0.0
    %56 = vmatprep.subr.mxu0 0.0
    %57 = vmatpush1.msra.mxu0 0.0
    %58 = vmatprep.subr.mxu0 0.0
    %59 = vmatpush1.msra.mxu0 0.0
    %60 = vmatprep.subr.mxu0 0.0
    %61 = vmatpush1.msra.mxu0 0.0
    %62 = vmatprep.subr.mxu0 0.0
    %63 = vmatpush1.msra.mxu0 0.0
    %64 = vmatprep.subr.mxu0 0.0
    %65 = vmatpush1.msra.mxu0 0.0
    %66 = vmatprep.subr.mxu0 0.0
    %67 = vmatpush1.msra.mxu0 0.0
    %68 = vmatprep.subr.mxu0 0.0
    %69 = vmatpush1.msra.mxu0 0.0
    %70 = vmatprep.subr.mxu0 0.0
    %71 = vmatpush1.msra.mxu0 0.0
    %72 = vmatprep.subr.mxu0 0.0
    %73 = vmatpush1.msra.mxu0 0.0
    %74 = vmatprep.subr.mxu0 0.0
    %75 = vmatpush1.msra.mxu0 0.0
    %76 = vmatprep.subr.mxu0 0.0
    %77 = vmatpush1.msra.mxu0 0.0
    %78 = vmatprep.subr.mxu0 0.0
    %79 = vmatpush1.msra.mxu0 0.0
    %80 = vmatprep.subr.mxu0 0.0
    %81 = vmatpush1.msra.mxu0 0.0
    %82 = vmatprep.subr.mxu0 0.0
    %83 = vmatpush1.msra.mxu0 0.0
    %84 = vmatprep.subr.mxu0 0.0
    %85 = vmatpush1.msra.mxu0 0.0
    %86 = vmatprep.subr.mxu0 0.0
    %87 = vmatpush1.msra.mxu0 0.0
    %88 = vmatprep.subr.mxu0 0.0
    %89 = vmatpush1.msra.mxu0 0.0
    %90 = vmatprep.subr.mxu0 0.0
    %91 = vmatpush1.msra.mxu0 0.0
    %92 = vmatprep.mubr.f32.mxu0 0.0
    %93 = vmatmul.mubr.f32.gmra.mrb[0].mxu0 %v26
    %v94 = vpop.f32.mrb[0].mxu0
    %v95 = vadd.f32 0.0, %v94
    %v96 = vpop.f32.mrb[0].mxu0
    %97 = vdwg.mxu0
    %v99 = vsel %vm24, %v19, 0
    %101 = vmatprep.subr.mxu0 0.0
    %102 = vmatpush1.msra.mxu0 %v20
    %103 = vmatprep.subr.mxu0 0.0
    %104 = vmatpush1.msra.mxu0 %v21
    %105 = vmatprep.subr.mxu0 0.0
    %106 = vmatpush1.msra.mxu0 0.0
    %107 = vmatprep.subr.mxu0 0.0
    %108 = vmatpush1.msra.mxu0 0.0
    %109 = vmatprep.subr.mxu0 0.0
    %110 = vmatpush1.msra.mxu0 0.0
    %111 = vmatprep.subr.mxu0 0.0
    %112 = vmatpush1.msra.mxu0 0.0
    %113 = vmatprep.subr.mxu0 0.0
    %114 = vmatpush1.msra.mxu0 0.0
    %115 = vmatprep.subr.mxu0 0.0
    %116 = vmatpush1.msra.mxu0 0.0
    %117 = vmatprep.subr.mxu0 0.0
    %118 = vmatpush1.msra.mxu0 0.0
    %119 = vmatprep.subr.mxu0 0.0
    %120 = vmatpush1.msra.mxu0 0.0
    %121 = vmatprep.subr.mxu0 0.0
    %122 = vmatpush1.msra.mxu0 0.0
    %123 = vmatprep.subr.mxu0 0.0
    %124 = vmatpush1.msra.mxu0 0.0
    %125 = vmatprep.subr.mxu0 0.0
    %126 = vmatpush1.msra.mxu0 0.0
    %127 = vmatprep.subr.mxu0 0.0
    %128 = vmatpush1.msra.mxu0 0.0
    %129 = vmatprep.subr.mxu0 0.0
    %130 = vmatpush1.msra.mxu0 0.0
    %131 = vmatprep.subr.mxu0 0.0
    %132 = vmatpush1.msra.mxu0 0.0
    %133 = vmatprep.subr.mxu0 0.0
    %134 = vmatpush1.msra.mxu0 0.0
    %135 = vmatprep.subr.mxu0 0.0
    %136 = vmatpush1.msra.mxu0 0.0
    %137 = vmatprep.subr.mxu0 0.0
    %138 = vmatpush1.msra.mxu0 0.0
    %139 = vmatprep.subr.mxu0 0.0
    %140 = vmatpush1.msra.mxu0 0.0
    %141 = vmatprep.subr.mxu0 0.0
    %142 = vmatpush1.msra.mxu0 0.0
    %143 = vmatprep.subr.mxu0 0.0
    %144 = vmatpush1.msra.mxu0 0.0
    %145 = vmatprep.subr.mxu0 0.0
    %146 = vmatpush1.msra.mxu0 0.0
    %147 = vmatprep.subr.mxu0 0.0
    %148 = vmatpush1.msra.mxu0 0.0
    %149 = vmatprep.subr.mxu0 0.0
    %150 = vmatpush1.msra.mxu0 0.0
    %151 = vmatprep.subr.mxu0 0.0
    %152 = vmatpush1.msra.mxu0 0.0
    %153 = vmatprep.subr.mxu0 0.0
    %154 = vmatpush1.msra.mxu0 0.0
    %155 = vmatprep.subr.mxu0 0.0
    %156 = vmatpush1.msra.mxu0 0.0
    %157 = vmatprep.subr.mxu0 0.0
    %158 = vmatpush1.msra.mxu0 0.0
    %159 = vmatprep.subr.mxu0 0.0
    %160 = vmatpush1.msra.mxu0 0.0
    %161 = vmatprep.subr.mxu0 0.0
    %162 = vmatpush1.msra.mxu0 0.0
    %163 = vmatprep.subr.mxu0 0.0
    %164 = vmatpush1.msra.mxu0 0.0
    %165 = vmatprep.mubr.f32.mxu0 0.0
    %166 = vmatmul.mubr.f32.gmra.mrb[0].mxu0 %v99
    %v167 = vpop.f32.mrb[0].mxu0
    %v168 = vadd.f32 %v95, %v167
    %v169 = vpop.f32.mrb[0].mxu0
    %170 = vdwg.mxu0
    %v171 = vld [vmem:[%s3] sm:$0x1]
    %v173 = vlaneseq
    %v174 = vshrl.u32 %v173, 7
    %v175 = vsub.s32 0, %v174
    %v176 = vrot.slane %v171, %v175
    %v178 = vadd.f32 %v168, %v176
    %v179 = vmax.f32 %v178, 1e-12
    %v180 = vrcp.pop %v179
    %v181 = vmul.f32 %v179, %v180
    %v182 = vsub.f32 2.0, %v181
    %v183 = vmul.f32 %v180, %v182
    %vm184 = vcmask 64512
    %v185 = vsel %vm184, %v183, 0.0
    %186 = vadd.xlane.f32.xlu0 %v185
    %v187 = vpop.xlane.xlu0 %186
    %v188 = vrcp.pop %v187
    %v189 = vmul.f32 %v187, %v188
    %v190 = vsub.f32 2.0, %v189
    %v191 = vmul.f32 %v188, %v190
    %v192 = vmul.f32 %v183, %v191
    %193 = vst.msk [vmem:[#allocation2] sm:$0xff] %vm184, %v192
    // Predicated region
    $region18: #{tpu_custom_call.1} parent=1 // pred_check
      _
    $region19: #{tpu_custom_call.1} parent=1 // pred_check_branch
      %195 = sbr.rel (0) target = $region21
    $region20: #{tpu_custom_call.1} parent=1 // pred_region
      %s197 = ssub.s32 128, 128
      %198 = vsyncadd [#allocation3], %s197
      %s200 = sshll.u32 [#allocation2], 4
      %s201 = int_to_ptr.vmem [resolvable:$true] %s200
      %203 = dma.vmem_to_hbm [thread:$0]  %s201, 128, %s4, [#allocation3]
    $region21: #{tpu_custom_call.1} parent=1 // pred_fallthru
      _
    // Predicated region
    $region22: #{tpu_custom_call.1} parent=1 // pred_check
      _
    $region23: #{tpu_custom_call.1} parent=1 // pred_check_branch
      %205 = sbr.rel (0) target = $region25
    $region24: #{tpu_custom_call.1} parent=1 // pred_region
      %206 = dma.done [#allocation3], 128
    $region25: #{tpu_custom_call.1} parent=1 // pred_fallthru
      _
    %207 = vsyncpa [#allocation3], 1

</llo_original>
